<compile_context>
chip_gen: v5e
topology: v5e:2x2
jax: 0.10.0
libtpu: 0.0.40
codegen_flags: <defaults>
</compile_context>

<pallas_src>
import math

import jax
import jax.numpy as jnp
import numpy as np
from jax.experimental import pallas as pl
from jax.experimental.pallas import tpu as pltpu


def _make_bottleneck_kernel(H, W, Cout):
    HW = H * W

    def kernel(x_ref, s1_ref, t1_ref, w1_ref, t2_ref, w2_ref, m_ref, o_ref):
        # x_ref:  (1, Cin, HW)   one image; spatial flattened onto the lane axis
        # s1/t1:  (Cin, 1)       folded BN1 scale / shift (eval mode)
        # w1_ref: (Cmid, Cin)    1x1-conv weight with BN2 scale folded in (bf16)
        # t2_ref: (Cmid, 1)      BN2 shift
        # w2_ref: (9*Cout, Cmid) 3x3-conv taps stacked tap-major (bf16)
        # m_ref:  (9, HW)        per-tap zero-padding masks (f32)
        # o_ref:  (1, Cout, HW)  new features only (concat done by wrapper)

        # BN1 (eval mode) + ReLU.
        x = x_ref[0]                                              # (Cin, HW) f32
        a1 = jnp.maximum(x * s1_ref[...] + t1_ref[...], 0.0)

        # 1x1 conv == channel matmul on the MXU (bf16 in, f32 accumulate).
        # BN2 scale is already folded into w1; only the shift + ReLU remain.
        h1 = jnp.dot(w1_ref[...], a1.astype(jnp.bfloat16),
                     preferred_element_type=jnp.float32)          # (Cmid, HW)
        a2 = jnp.maximum(h1 + t2_ref[...], 0.0)

        # 3x3 conv (padding=1): one fused matmul for all 9 taps, then per-tap
        # output-side lane-roll + boundary mask.  For valid positions the rolled
        # index never wraps, so roll+mask is exactly equivalent to zero padding.
        y = jnp.dot(w2_ref[...], a2.astype(jnp.bfloat16),
                    preferred_element_type=jnp.float32)           # (9*Cout, HW)
        m = m_ref[...]                                            # (9, HW)

        # Center tap (dh=dw=0): no shift, no mask.
        acc = y[4 * Cout:5 * Cout]                                # (Cout, HW)
        for kh in range(3):
            for kw in range(3):
                tap = kh * 3 + kw
                if tap == 4:
                    continue
                s = (kh - 1) * W + (kw - 1)
                ytap = y[tap * Cout:(tap + 1) * Cout]             # (Cout, HW)
                rolled = pltpu.roll(ytap, (-s) % HW, axis=1)      # rolled[p] = ytap[p+s]
                acc = acc + rolled * m[tap:tap + 1, :]
        o_ref[...] = acc.reshape(1, Cout, HW).astype(o_ref.dtype)

    return kernel


def bottleneck_forward_nchw(x, g1, b1, rm1, rv1, conv1_w,
                            g2, b2, rm2, rv2, conv2_w, eps=1e-5):
    """x: (N, Cin, H, W) f32. conv1_w: (Cmid, Cin, 1, 1). conv2_w: (Cout, Cmid, 3, 3)."""
    N, Cin, H, W = x.shape
    Cmid = conv1_w.shape[0]
    Cout = conv2_w.shape[0]
    HW = H * W

    # Fold eval-mode BN running stats into per-channel scale/shift.
    s1 = (g1 / jnp.sqrt(rv1 + eps)).astype(jnp.float32)
    t1 = (b1 - rm1 * s1).astype(jnp.float32)
    s2 = (g2 / jnp.sqrt(rv2 + eps)).astype(jnp.float32)
    t2 = (b2 - rm2 * s2).astype(jnp.float32)

    # NCHW -> (N, Cin, H*W): pure reshape (no transpose); channels stay on sublanes,
    # spatial lands on the 128-lane axis.
    x_flat = x.reshape(N, Cin, HW).astype(jnp.float32)

    # 1x1-conv weight as a (Cmid, Cin) matmul operand, BN2 scale folded in, bf16.
    w1m = (conv1_w.reshape(Cmid, Cin) * s2[:, None]).astype(jnp.bfloat16)

    # 3x3-conv taps stacked tap-major along rows: (9*Cout, Cmid), bf16.
    w2cat = jnp.transpose(conv2_w, (2, 3, 0, 1)).reshape(9 * Cout, Cmid).astype(jnp.bfloat16)

    # Precompute the 9 boundary masks (static, lane-major, ~9*HW floats).
    hh = np.repeat(np.arange(H), W)
    ww = np.tile(np.arange(W), H)
    masks = np.zeros((9, HW), np.float32)
    for kh in range(3):
        for kw in range(3):
            dh, dw = kh - 1, kw - 1
            valid = ((hh + dh >= 0) & (hh + dh < H) & (ww + dw >= 0) & (ww + dw < W))
            masks[kh * 3 + kw] = valid.astype(np.float32)
    masks = jnp.asarray(masks)

    flops = 2 * N * HW * Cmid * (Cin + 9 * Cout)
    bytes_accessed = (4 * (N * Cin * HW + N * Cout * HW)          # activations in/out
                      + 2 * (Cmid * Cin + 9 * Cout * Cmid)         # bf16 weights
                      + 4 * (2 * Cin + Cmid + 9 * HW))             # BN params + masks

    out_flat = pl.pallas_call(
        _make_bottleneck_kernel(H, W, Cout),
        out_shape=jax.ShapeDtypeStruct((N, Cout, HW), jnp.float32),
        grid_spec=pltpu.PrefetchScalarGridSpec(
            num_scalar_prefetch=0,
            grid=(N,),
            in_specs=[
                pl.BlockSpec((1, Cin, HW), lambda n: (n, 0, 0)),
                pl.BlockSpec((Cin, 1), lambda n: (0, 0)),
                pl.BlockSpec((Cin, 1), lambda n: (0, 0)),
                pl.BlockSpec((Cmid, Cin), lambda n: (0, 0)),
                pl.BlockSpec((Cmid, 1), lambda n: (0, 0)),
                pl.BlockSpec((9 * Cout, Cmid), lambda n: (0, 0)),
                pl.BlockSpec((9, HW), lambda n: (0, 0)),
            ],
            out_specs=pl.BlockSpec((1, Cout, HW), lambda n: (n, 0, 0)),
        ),
        compiler_params=pltpu.CompilerParams(
            dimension_semantics=("parallel",)),
        cost_estimate=pl.CostEstimate(flops=flops, transcendentals=0,
                                      bytes_accessed=bytes_accessed),
    )(x_flat, s1.reshape(Cin, 1), t1.reshape(Cin, 1), w1m,
      t2.reshape(Cmid, 1), w2cat, masks)

    # torch.cat((x, out), 1): both operands are already channel-major NCHW, so this
    # is a contiguous channel append (no transposes needed).
    return jnp.concatenate([x.astype(jnp.float32),
                            out_flat.reshape(N, Cout, H, W)], axis=1)


def _reference_nchw(x, g1, b1, rm1, rv1, w1, g2, b2, rm2, rv2, w2, eps=1e-5):
    # Pure-JAX reference mirroring the PyTorch forward (eval-mode BN), f32 precision.
    def bn(y, g, b, m, v):
        inv = g / jnp.sqrt(v + eps)
        return y * inv[None, :, None, None] + (b - m * inv)[None, :, None, None]

    a1 = jnp.maximum(bn(x, g1, b1, rm1, rv1), 0.0)
    h1 = jnp.einsum("nchw,oc->nohw", a1, w1[:, :, 0, 0],
                    precision=jax.lax.Precision.HIGHEST)
    a2 = jnp.maximum(bn(h1, g2, b2, rm2, rv2), 0.0)
    out = jax.lax.conv_general_dilated(
        a2, w2, window_strides=(1, 1), padding="SAME",
        dimension_numbers=("NCHW", "OIHW", "NCHW"),
        precision=jax.lax.Precision.HIGHEST)
    return jnp.concatenate([x, out], axis=1)


if __name__ == "__main__":
    # Module config: nChannels=32, growthRate=8 -> interChannels=32, output C = 40.
    nChannels, growthRate = 32, 8
    interChannels = 4 * growthRate
    N, H, W = 2, 16, 16

    key = jax.random.PRNGKey(0)
    ks = jax.random.split(key, 11)

    x = jax.random.normal(ks[0], (N, nChannels, H, W), dtype=jnp.float32)

    g1 = 1.0 + 0.1 * jax.random.normal(ks[1], (nChannels,), dtype=jnp.float32)
    b1 = 0.1 * jax.random.normal(ks[2], (nChannels,), dtype=jnp.float32)
    rm1 = 0.1 * jax.random.normal(ks[3], (nChannels,), dtype=jnp.float32)
    rv1 = 1.0 + 0.1 * jax.random.uniform(ks[4], (nChannels,), dtype=jnp.float32)
    conv1_w = jax.random.normal(ks[5], (interChannels, nChannels, 1, 1),
                                dtype=jnp.float32) / math.sqrt(nChannels)

    g2 = 1.0 + 0.1 * jax.random.normal(ks[6], (interChannels,), dtype=jnp.float32)
    b2 = 0.1 * jax.random.normal(ks[7], (interChannels,), dtype=jnp.float32)
    rm2 = 0.1 * jax.random.normal(ks[8], (interChannels,), dtype=jnp.float32)
    rv2 = 1.0 + 0.1 * jax.random.uniform(ks[9], (interChannels,), dtype=jnp.float32)
    conv2_w = jax.random.normal(ks[10], (growthRate, interChannels, 3, 3),
                                dtype=jnp.float32) / math.sqrt(9 * interChannels)

    out = bottleneck_forward_nchw(x, g1, b1, rm1, rv1, conv1_w,
                                  g2, b2, rm2, rv2, conv2_w)
    out = jax.block_until_ready(out)

    ref = _reference_nchw(x, g1, b1, rm1, rv1, conv1_w, g2, b2, rm2, rv2, conv2_w)
    assert out.shape == (N, nChannels + growthRate, H, W), out.shape
    # bf16 MXU inputs (f32 accumulate) => compare against the f32 reference with
    # a tolerance a few x the expected bf16 rounding error.
    np.testing.assert_allclose(np.asarray(out), np.asarray(ref), rtol=3e-2, atol=3e-2)
    print("KERNEL_OK")
</pallas_src>

<mosaic_0001>
module attributes {stable_mosaic.version = 11 : i64} {
  func.func @kernel(%arg0: i32, %arg1: memref<1x32x256xf32, #tpu.memory_space<vmem>>, %arg2: memref<32x1xf32, #tpu.memory_space<vmem>>, %arg3: memref<32x1xf32, #tpu.memory_space<vmem>>, %arg4: memref<32x32xbf16, #tpu.memory_space<vmem>>, %arg5: memref<32x1xf32, #tpu.memory_space<vmem>>, %arg6: memref<72x32xbf16, #tpu.memory_space<vmem>>, %arg7: memref<9x256xf32, #tpu.memory_space<vmem>>, %arg8: memref<1x8x256xf32, #tpu.memory_space<vmem>>) attributes {dimension_semantics = [#tpu.dimension_semantics<parallel>], iteration_bounds = array<i64: 2>, scalar_prefetch = 0 : i64, scratch_operands = 0 : i64, tpu.core_type = #tpu.core_type<tc>, window_params = [{transform_indices = @transform_0, window_bounds = array<i64: 1, 32, 256>}, {pipeline_mode = #tpu.pipeline_mode<synchronous>, transform_indices = @transform_1, window_bounds = array<i64: 32, 1>}, {pipeline_mode = #tpu.pipeline_mode<synchronous>, transform_indices = @transform_2, window_bounds = array<i64: 32, 1>}, {pipeline_mode = #tpu.pipeline_mode<synchronous>, transform_indices = @transform_3, window_bounds = array<i64: 32, 32>}, {pipeline_mode = #tpu.pipeline_mode<synchronous>, transform_indices = @transform_4, window_bounds = array<i64: 32, 1>}, {pipeline_mode = #tpu.pipeline_mode<synchronous>, transform_indices = @transform_5, window_bounds = array<i64: 72, 32>}, {pipeline_mode = #tpu.pipeline_mode<synchronous>, transform_indices = @transform_6, window_bounds = array<i64: 9, 256>}, {transform_indices = @transform_7, window_bounds = array<i64: 1, 8, 256>}]} {
    %c0 = arith.constant 0 : index
    %c0_0 = arith.constant 0 : index
    %c0_1 = arith.constant 0 : index
    %0 = vector.load %arg1[%c0, %c0_0, %c0_1] : memref<1x32x256xf32, #tpu.memory_space<vmem>>, vector<1x32x256xf32>
    %1 = vector.shape_cast %0 : vector<1x32x256xf32> to vector<32x256xf32>
    %c0_2 = arith.constant 0 : index
    %c0_3 = arith.constant 0 : index
    %2 = vector.load %arg2[%c0_2, %c0_3] : memref<32x1xf32, #tpu.memory_space<vmem>>, vector<32x1xf32>
    %3 = vector.broadcast %2 : vector<32x1xf32> to vector<32x256xf32>
    %4 = arith.mulf %1, %3 : vector<32x256xf32>
    %c0_4 = arith.constant 0 : index
    %c0_5 = arith.constant 0 : index
    %5 = vector.load %arg3[%c0_4, %c0_5] : memref<32x1xf32, #tpu.memory_space<vmem>>, vector<32x1xf32>
    %6 = vector.broadcast %5 : vector<32x1xf32> to vector<32x256xf32>
    %7 = arith.addf %4, %6 : vector<32x256xf32>
    %cst = arith.constant 0.000000e+00 : f32
    %8 = vector.broadcast %cst : f32 to vector<32x256xf32>
    %9 = arith.maximumf %7, %8 : vector<32x256xf32>
    %c0_6 = arith.constant 0 : index
    %c0_7 = arith.constant 0 : index
    %10 = vector.load %arg4[%c0_6, %c0_7] : memref<32x32xbf16, #tpu.memory_space<vmem>>, vector<32x32xbf16>
    %11 = arith.truncf %9 : vector<32x256xf32> to vector<32x256xbf16>
    %cst_8 = arith.constant dense<0.000000e+00> : vector<32x256xf32>
    %12 = tpu.matmul %10, %11, %cst_8 {dimension_numbers = #tpu.dot_dimension_numbers<[1], [0], [0], [1], [0, 0, 1, 1], [], []>} : vector<32x32xbf16>, vector<32x256xbf16>, vector<32x256xf32> -> vector<32x256xf32>
    %c0_9 = arith.constant 0 : index
    %c0_10 = arith.constant 0 : index
    %13 = vector.load %arg5[%c0_9, %c0_10] : memref<32x1xf32, #tpu.memory_space<vmem>>, vector<32x1xf32>
    %14 = vector.broadcast %13 : vector<32x1xf32> to vector<32x256xf32>
    %15 = arith.addf %12, %14 : vector<32x256xf32>
    %cst_11 = arith.constant 0.000000e+00 : f32
    %16 = vector.broadcast %cst_11 : f32 to vector<32x256xf32>
    %17 = arith.maximumf %15, %16 : vector<32x256xf32>
    %c0_12 = arith.constant 0 : index
    %c0_13 = arith.constant 0 : index
    %18 = vector.load %arg6[%c0_12, %c0_13] : memref<72x32xbf16, #tpu.memory_space<vmem>>, vector<72x32xbf16>
    %19 = arith.truncf %17 : vector<32x256xf32> to vector<32x256xbf16>
    %cst_14 = arith.constant dense<0.000000e+00> : vector<72x256xf32>
    %20 = tpu.matmul %18, %19, %cst_14 {dimension_numbers = #tpu.dot_dimension_numbers<[1], [0], [0], [1], [0, 0, 1, 1], [], []>} : vector<72x32xbf16>, vector<32x256xbf16>, vector<72x256xf32> -> vector<72x256xf32>
    %c0_15 = arith.constant 0 : index
    %c0_16 = arith.constant 0 : index
    %21 = vector.load %arg7[%c0_15, %c0_16] : memref<9x256xf32, #tpu.memory_space<vmem>>, vector<9x256xf32>
    %22 = vector.extract_strided_slice %20 {offsets = [32, 0], sizes = [8, 256], strides = [1, 1]} : vector<72x256xf32> to vector<8x256xf32>
    %23 = vector.extract_strided_slice %20 {offsets = [0, 0], sizes = [8, 256], strides = [1, 1]} : vector<72x256xf32> to vector<8x256xf32>
    %c17_i32 = arith.constant 17 : i32
    %24 = tpu.dynamic_rotate %23 by %c17_i32 dim 1 : vector<8x256xf32>, i32 -> vector<8x256xf32>
    %25 = vector.extract_strided_slice %21 {offsets = [0, 0], sizes = [1, 256], strides = [1, 1]} : vector<9x256xf32> to vector<1x256xf32>
    %26 = vector.broadcast %25 : vector<1x256xf32> to vector<8x256xf32>
    %27 = arith.mulf %24, %26 : vector<8x256xf32>
    %28 = arith.addf %22, %27 : vector<8x256xf32>
    %29 = vector.extract_strided_slice %20 {offsets = [8, 0], sizes = [8, 256], strides = [1, 1]} : vector<72x256xf32> to vector<8x256xf32>
    %c16_i32 = arith.constant 16 : i32
    %30 = tpu.dynamic_rotate %29 by %c16_i32 dim 1 : vector<8x256xf32>, i32 -> vector<8x256xf32>
    %31 = vector.extract_strided_slice %21 {offsets = [1, 0], sizes = [1, 256], strides = [1, 1]} : vector<9x256xf32> to vector<1x256xf32>
    %32 = vector.broadcast %31 : vector<1x256xf32> to vector<8x256xf32>
    %33 = arith.mulf %30, %32 : vector<8x256xf32>
    %34 = arith.addf %28, %33 : vector<8x256xf32>
    %35 = vector.extract_strided_slice %20 {offsets = [16, 0], sizes = [8, 256], strides = [1, 1]} : vector<72x256xf32> to vector<8x256xf32>
    %c15_i32 = arith.constant 15 : i32
    %36 = tpu.dynamic_rotate %35 by %c15_i32 dim 1 : vector<8x256xf32>, i32 -> vector<8x256xf32>
    %37 = vector.extract_strided_slice %21 {offsets = [2, 0], sizes = [1, 256], strides = [1, 1]} : vector<9x256xf32> to vector<1x256xf32>
    %38 = vector.broadcast %37 : vector<1x256xf32> to vector<8x256xf32>
    %39 = arith.mulf %36, %38 : vector<8x256xf32>
    %40 = arith.addf %34, %39 : vector<8x256xf32>
    %41 = vector.extract_strided_slice %20 {offsets = [24, 0], sizes = [8, 256], strides = [1, 1]} : vector<72x256xf32> to vector<8x256xf32>
    %c1_i32 = arith.constant 1 : i32
    %42 = tpu.dynamic_rotate %41 by %c1_i32 dim 1 : vector<8x256xf32>, i32 -> vector<8x256xf32>
    %43 = vector.extract_strided_slice %21 {offsets = [3, 0], sizes = [1, 256], strides = [1, 1]} : vector<9x256xf32> to vector<1x256xf32>
    %44 = vector.broadcast %43 : vector<1x256xf32> to vector<8x256xf32>
    %45 = arith.mulf %42, %44 : vector<8x256xf32>
    %46 = arith.addf %40, %45 : vector<8x256xf32>
    %47 = vector.extract_strided_slice %20 {offsets = [40, 0], sizes = [8, 256], strides = [1, 1]} : vector<72x256xf32> to vector<8x256xf32>
    %c255_i32 = arith.constant 255 : i32
    %48 = tpu.dynamic_rotate %47 by %c255_i32 dim 1 : vector<8x256xf32>, i32 -> vector<8x256xf32>
    %49 = vector.extract_strided_slice %21 {offsets = [5, 0], sizes = [1, 256], strides = [1, 1]} : vector<9x256xf32> to vector<1x256xf32>
    %50 = vector.broadcast %49 : vector<1x256xf32> to vector<8x256xf32>
    %51 = arith.mulf %48, %50 : vector<8x256xf32>
    %52 = arith.addf %46, %51 : vector<8x256xf32>
    %53 = vector.extract_strided_slice %20 {offsets = [48, 0], sizes = [8, 256], strides = [1, 1]} : vector<72x256xf32> to vector<8x256xf32>
    %c241_i32 = arith.constant 241 : i32
    %54 = tpu.dynamic_rotate %53 by %c241_i32 dim 1 : vector<8x256xf32>, i32 -> vector<8x256xf32>
    %55 = vector.extract_strided_slice %21 {offsets = [6, 0], sizes = [1, 256], strides = [1, 1]} : vector<9x256xf32> to vector<1x256xf32>
    %56 = vector.broadcast %55 : vector<1x256xf32> to vector<8x256xf32>
    %57 = arith.mulf %54, %56 : vector<8x256xf32>
    %58 = arith.addf %52, %57 : vector<8x256xf32>
    %59 = vector.extract_strided_slice %20 {offsets = [56, 0], sizes = [8, 256], strides = [1, 1]} : vector<72x256xf32> to vector<8x256xf32>
    %c240_i32 = arith.constant 240 : i32
    %60 = tpu.dynamic_rotate %59 by %c240_i32 dim 1 : vector<8x256xf32>, i32 -> vector<8x256xf32>
    %61 = vector.extract_strided_slice %21 {offsets = [7, 0], sizes = [1, 256], strides = [1, 1]} : vector<9x256xf32> to vector<1x256xf32>
    %62 = vector.broadcast %61 : vector<1x256xf32> to vector<8x256xf32>
    %63 = arith.mulf %60, %62 : vector<8x256xf32>
    %64 = arith.addf %58, %63 : vector<8x256xf32>
    %65 = vector.extract_strided_slice %20 {offsets = [64, 0], sizes = [8, 256], strides = [1, 1]} : vector<72x256xf32> to vector<8x256xf32>
    %c239_i32 = arith.constant 239 : i32
    %66 = tpu.dynamic_rotate %65 by %c239_i32 dim 1 : vector<8x256xf32>, i32 -> vector<8x256xf32>
    %67 = vector.extract_strided_slice %21 {offsets = [8, 0], sizes = [1, 256], strides = [1, 1]} : vector<9x256xf32> to vector<1x256xf32>
    %68 = vector.broadcast %67 : vector<1x256xf32> to vector<8x256xf32>
    %69 = arith.mulf %66, %68 : vector<8x256xf32>
    %70 = arith.addf %64, %69 : vector<8x256xf32>
    %71 = vector.shape_cast %70 : vector<8x256xf32> to vector<1x8x256xf32>
    %c0_17 = arith.constant 0 : index
    %c0_18 = arith.constant 0 : index
    %c0_19 = arith.constant 0 : index
    %72 = vector.load %arg8[%c0_17, %c0_18, %c0_19] : memref<1x8x256xf32, #tpu.memory_space<vmem>>, vector<1x8x256xf32>
    tpu.vector_store %arg8[%c0_17, %c0_18, %c0_19], %71 {strides = array<i32>} : memref<1x8x256xf32, #tpu.memory_space<vmem>>, vector<1x8x256xf32>,
    return
  }
  func.func @transform_0(%arg0: i32) -> (i32, i32, i32) {
    %c0_i32 = arith.constant 0 : i32
    %c0_i32_0 = arith.constant 0 : i32
    %c0_i32_1 = arith.constant 0 : i32
    return %arg0, %c0_i32, %c0_i32_0 : i32, i32, i32
  }
  func.func @transform_1(%arg0: i32) -> (i32, i32) {
    %c0_i32 = arith.constant 0 : i32
    %c0_i32_0 = arith.constant 0 : i32
    %c0_i32_1 = arith.constant 0 : i32
    return %c0_i32, %c0_i32_0 : i32, i32
  }
  func.func @transform_2(%arg0: i32) -> (i32, i32) {
    %c0_i32 = arith.constant 0 : i32
    %c0_i32_0 = arith.constant 0 : i32
    %c0_i32_1 = arith.constant 0 : i32
    return %c0_i32, %c0_i32_0 : i32, i32
  }
  func.func @transform_3(%arg0: i32) -> (i32, i32) {
    %c0_i32 = arith.constant 0 : i32
    %c0_i32_0 = arith.constant 0 : i32
    %c0_i32_1 = arith.constant 0 : i32
    return %c0_i32, %c0_i32_0 : i32, i32
  }
  func.func @transform_4(%arg0: i32) -> (i32, i32) {
    %c0_i32 = arith.constant 0 : i32
    %c0_i32_0 = arith.constant 0 : i32
    %c0_i32_1 = arith.constant 0 : i32
    return %c0_i32, %c0_i32_0 : i32, i32
  }
  func.func @transform_5(%arg0: i32) -> (i32, i32) {
    %c0_i32 = arith.constant 0 : i32
    %c0_i32_0 = arith.constant 0 : i32
    %c0_i32_1 = arith.constant 0 : i32
    return %c0_i32, %c0_i32_0 : i32, i32
  }
  func.func @transform_6(%arg0: i32) -> (i32, i32) {
    %c0_i32 = arith.constant 0 : i32
    %c0_i32_0 = arith.constant 0 : i32
    %c0_i32_1 = arith.constant 0 : i32
    return %c0_i32, %c0_i32_0 : i32, i32
  }
  func.func @transform_7(%arg0: i32) -> (i32, i32, i32) {
    %c0_i32 = arith.constant 0 : i32
    %c0_i32_0 = arith.constant 0 : i32
    %c0_i32_1 = arith.constant 0 : i32
    return %arg0, %c0_i32, %c0_i32_0 : i32, i32, i32
  }
}

</mosaic_0001>

<llo_original>
// kernel: tpu_custom_call.1
$region0: #{tpu_custom_call.1}
  #allocation0 [shape = 'u32[]', space=smem, size = 0x4, offset = 0x4, fixed_abs, tag = 'smem constant byte address 0x4 - core index']
  #allocation1 [shape = 'u32[72,128]{1,0:T(1,128)}', space=vmem, size = 0x9000, scoped, tag = 'internal scratch']
  %s0 = inlined_call_operand.vmem [shape: f32[2,32,256], index: 0, kind: input, shape index: {}]
  %s1 = inlined_call_operand.vmem [shape: f32[32,1], index: 1, kind: input, shape index: {}]
  %s2 = inlined_call_operand.vmem [shape: f32[32,1], index: 2, kind: input, shape index: {}]
  %s3 = inlined_call_operand.hbm [shape: bf16[32,32], index: 3, kind: input, shape index: {}]
  %s4 = inlined_call_operand.vmem [shape: f32[32,1], index: 4, kind: input, shape index: {}]
  %s5 = inlined_call_operand.vmem [shape: bf16[72,32], index: 5, kind: input, shape index: {}]
  %s6 = inlined_call_operand.hbm [shape: f32[9,256], index: 6, kind: input, shape index: {}]
  %s7 = inlined_call_operand.hbm [shape: f32[2,8,256], index: 7, kind: output, shape index: {}]
  %s8 = sld [smem:[#allocation0]]
  $region69: #{tpu_custom_call.1} parent=0
    _
  %s10 = ssub.s32 1, %s8
  %s11 = scalar_select 0, %s10, %s8
  $region1: #{tpu_custom_call.1} parent=0
    #allocation2 [shape = 'u8[8192]{0}', space=vmem, size = 0x2000, scoped, tag = 'input window, operand 3, single buffered']
    #allocation3 [shape = 's32[2]{0}', space=sflag, size = 0x8, scoped, tag = 'scoped memory for tpu_custom_call.1']
    #allocation4 [shape = 's32[2]{0}', space=sflag, size = 0x8, scoped, tag = 'scoped memory for tpu_custom_call.1']
    #allocation5 [shape = 'u8[16384]{0}', space=vmem, size = 0x4000, scoped, tag = 'input window, operand 6, single buffered']
    #allocation6 [shape = 's32[1]{0}', space=sflag, size = 0x4, scoped, tag = 'scoped memory for tpu_custom_call.1']
    #allocation7 [shape = 'u8[16384]{0}', space=vmem, size = 0x4000, scoped, tag = 'output window, operand 0']
    %12 = vsyncpa [#allocation3], 0
    %13 = vsyncpa [#allocation6], 0
    %14 = vsyncpa [#allocation4], 0
    %s15 = scalar_lea.sflag [#allocation4], 1
    %16 = vsyncpa %s15, 0
    loop: start=0, step=1, limit=4
    $region2: #{tpu_custom_call.1} parent=1 // loop_pre_header
      _
    $region3: #{tpu_custom_call.1} parent=1 // loop_header
      %s18 = sphi 0, %s22
      %p19 = scmp.ge.s32.totalorder %s18, 4
      %s28 = sphi 0, %s30
      %s31 = sphi 0, %s28
      %s32 = sphi 0, %s31
      %s48 = sphi 0, %s32
      %s52 = sphi 0, %s52
      %s54 = sphi 0, %s52
      %s55 = sphi 0, %s54
      %s69 = sphi 0, %s55
      %s73 = sphi 0, %s73
      %s75 = sphi 0, %s73
      %s76 = sphi 0, %s75
      %s90 = sphi 0, %s76
      %s94 = sphi 0, %s94
      %s96 = sphi 0, %s94
      %s97 = sphi 0, %s96
      %s111 = sphi 0, %s97
      %s115 = sphi 0, %s115
      %s117 = sphi 0, %s115
      %s118 = sphi 0, %s117
      %s132 = sphi 0, %s118
      %s136 = sphi 0, %s136
      %s138 = sphi 0, %s136
      %s139 = sphi 0, %s138
      %s153 = sphi 0, %s139
      %s157 = sphi 0, %s157
      %s159 = sphi 0, %s157
      %s160 = sphi 0, %s159
      %s174 = sphi 0, %s160
      %s180 = sphi 0, %s182
      %s183 = sphi 0, %s180
      %s184 = sphi 0, %s183
      %s200 = sphi 0, %s184
    $region4: #{tpu_custom_call.1} parent=1 // loop_header_branch
      %21 = sbr.rel (%p19) target = $region8
    $region5: #{tpu_custom_call.1} parent=1 // loop_body
      %s23 = ssub.s32 %s18, 1
      %s24 = ssub.s32 %s18, 2
      %s25 = sadd.s32 %s18, 1
      %s26 = ssub.s32 %s18, %s25
      %p27 = scmp.eq.s32.totalorder %s26, 0
      %s29 = sadd.s32 %s28, 1
      %s30 = scalar_select %p27, %s28, %s29
      %p33 = pneg %p27
      %p34 = scmp.eq.s32.totalorder %s18, 1
      %p35 = por %p33, %p34
      %p36 = scmp.ne.s32.totalorder %s28, %s31
      %p37 = scmp.eq.s32.totalorder %s18, 0
      %p38 = por %p36, %p37
      %p39 = scmp.ne.s32.totalorder %s28, %s31
      %p40 = scmp.eq.s32.totalorder %s23, 1
      %p41 = por %p39, %p40
      %p42 = scmp.ne.s32.totalorder %s31, %s32
      %p43 = scmp.eq.s32.totalorder %s23, 0
      %p44 = por %p42, %p43
      %p45 = scmp.ne.s32.totalorder %s31, %s32
      %p46 = scmp.eq.s32.totalorder %s24, 1
      %p47 = por %p45, %p46
      %p49 = scmp.ne.s32.totalorder %s32, %s48
      %p50 = scmp.eq.s32.totalorder %s24, 0
      %p51 = por %p49, %p50
      %s53 = sadd.s32 %s52, 1
      %p56 = scmp.eq.s32.totalorder %s18, 1
      %p57 = scmp.ne.s32.totalorder %s52, %s54
      %p58 = scmp.eq.s32.totalorder %s18, 0
      %p59 = por %p57, %p58
      %p60 = scmp.ne.s32.totalorder %s52, %s54
      %p61 = scmp.eq.s32.totalorder %s23, 1
      %p62 = por %p60, %p61
      %p63 = scmp.ne.s32.totalorder %s54, %s55
      %p64 = scmp.eq.s32.totalorder %s23, 0
      %p65 = por %p63, %p64
      %p66 = scmp.ne.s32.totalorder %s54, %s55
      %p67 = scmp.eq.s32.totalorder %s24, 1
      %p68 = por %p66, %p67
      %p70 = scmp.ne.s32.totalorder %s55, %s69
      %p71 = scmp.eq.s32.totalorder %s24, 0
      %p72 = por %p70, %p71
      %s74 = sadd.s32 %s73, 1
      %p77 = scmp.eq.s32.totalorder %s18, 1
      %p78 = scmp.ne.s32.totalorder %s73, %s75
      %p79 = scmp.eq.s32.totalorder %s18, 0
      %p80 = por %p78, %p79
      %p81 = scmp.ne.s32.totalorder %s73, %s75
      %p82 = scmp.eq.s32.totalorder %s23, 1
      %p83 = por %p81, %p82
      %p84 = scmp.ne.s32.totalorder %s75, %s76
      %p85 = scmp.eq.s32.totalorder %s23, 0
      %p86 = por %p84, %p85
      %p87 = scmp.ne.s32.totalorder %s75, %s76
      %p88 = scmp.eq.s32.totalorder %s24, 1
      %p89 = por %p87, %p88
      %p91 = scmp.ne.s32.totalorder %s76, %s90
      %p92 = scmp.eq.s32.totalorder %s24, 0
      %p93 = por %p91, %p92
      %s95 = sadd.s32 %s94, 1
      %p98 = scmp.eq.s32.totalorder %s18, 1
      %p99 = scmp.ne.s32.totalorder %s94, %s96
      %p100 = scmp.eq.s32.totalorder %s18, 0
      %p101 = por %p99, %p100
      %p102 = scmp.ne.s32.totalorder %s94, %s96
      %p103 = scmp.eq.s32.totalorder %s23, 1
      %p104 = por %p102, %p103
      %p105 = scmp.ne.s32.totalorder %s96, %s97
      %p106 = scmp.eq.s32.totalorder %s23, 0
      %p107 = por %p105, %p106
      %p108 = scmp.ne.s32.totalorder %s96, %s97
      %p109 = scmp.eq.s32.totalorder %s24, 1
      %p110 = por %p108, %p109
      %p112 = scmp.ne.s32.totalorder %s97, %s111
      %p113 = scmp.eq.s32.totalorder %s24, 0
      %p114 = por %p112, %p113
      %s116 = sadd.s32 %s115, 1
      %p119 = scmp.eq.s32.totalorder %s18, 1
      %p120 = scmp.ne.s32.totalorder %s115, %s117
      %p121 = scmp.eq.s32.totalorder %s18, 0
      %p122 = por %p120, %p121
      %p123 = scmp.ne.s32.totalorder %s115, %s117
      %p124 = scmp.eq.s32.totalorder %s23, 1
      %p125 = por %p123, %p124
      %p126 = scmp.ne.s32.totalorder %s117, %s118
      %p127 = scmp.eq.s32.totalorder %s23, 0
      %p128 = por %p126, %p127
      %p129 = scmp.ne.s32.totalorder %s117, %s118
      %p130 = scmp.eq.s32.totalorder %s24, 1
      %p131 = por %p129, %p130
      %p133 = scmp.ne.s32.totalorder %s118, %s132
      %p134 = scmp.eq.s32.totalorder %s24, 0
      %p135 = por %p133, %p134
      %s137 = sadd.s32 %s136, 1
      %p140 = scmp.eq.s32.totalorder %s18, 1
      %p141 = scmp.ne.s32.totalorder %s136, %s138
      %p142 = scmp.eq.s32.totalorder %s18, 0
      %p143 = por %p141, %p142
      %p144 = scmp.ne.s32.totalorder %s136, %s138
      %p145 = scmp.eq.s32.totalorder %s23, 1
      %p146 = por %p144, %p145
      %p147 = scmp.ne.s32.totalorder %s138, %s139
      %p148 = scmp.eq.s32.totalorder %s23, 0
      %p149 = por %p147, %p148
      %p150 = scmp.ne.s32.totalorder %s138, %s139
      %p151 = scmp.eq.s32.totalorder %s24, 1
      %p152 = por %p150, %p151
      %p154 = scmp.ne.s32.totalorder %s139, %s153
      %p155 = scmp.eq.s32.totalorder %s24, 0
      %p156 = por %p154, %p155
      %s158 = sadd.s32 %s157, 1
      %p161 = scmp.eq.s32.totalorder %s18, 1
      %p162 = scmp.ne.s32.totalorder %s157, %s159
      %p163 = scmp.eq.s32.totalorder %s18, 0
      %p164 = por %p162, %p163
      %p165 = scmp.ne.s32.totalorder %s157, %s159
      %p166 = scmp.eq.s32.totalorder %s23, 1
      %p167 = por %p165, %p166
      %p168 = scmp.ne.s32.totalorder %s159, %s160
      %p169 = scmp.eq.s32.totalorder %s23, 0
      %p170 = por %p168, %p169
      %p171 = scmp.ne.s32.totalorder %s159, %s160
      %p172 = scmp.eq.s32.totalorder %s24, 1
      %p173 = por %p171, %p172
      %p175 = scmp.ne.s32.totalorder %s160, %s174
      %p176 = scmp.eq.s32.totalorder %s24, 0
      %p177 = por %p175, %p176
      %s178 = ssub.s32 %s18, %s25
      %p179 = scmp.eq.s32.totalorder %s178, 0
      %s181 = sadd.s32 %s180, 1
      %s182 = scalar_select %p179, %s180, %s181
      %p185 = pneg %p179
      %p186 = scmp.eq.s32.totalorder %s18, 1
      %p187 = por %p185, %p186
      %p188 = scmp.ne.s32.totalorder %s180, %s183
      %p189 = scmp.eq.s32.totalorder %s18, 0
      %p190 = por %p188, %p189
      %p191 = scmp.ne.s32.totalorder %s180, %s183
      %p192 = scmp.eq.s32.totalorder %s23, 1
      %p193 = por %p191, %p192
      %p194 = scmp.ne.s32.totalorder %s183, %s184
      %p195 = scmp.eq.s32.totalorder %s23, 0
      %p196 = por %p194, %p195
      %p197 = scmp.ne.s32.totalorder %s183, %s184
      %p198 = scmp.eq.s32.totalorder %s24, 1
      %p199 = por %p197, %p198
      %p201 = scmp.ne.s32.totalorder %s184, %s200
      %p202 = scmp.eq.s32.totalorder %s24, 0
      %p203 = por %p201, %p202
      %p204 = scmp.le.s32.totalorder 1, %s18
      %p205 = scmp.lt.s32.totalorder %s18, 3
      %p206 = pnand %p204, %p205
      %p207 = pneg %p206
      // Predicated region
      $region9: #{tpu_custom_call.1} parent=5 // pred_check
        _
      $region10: #{tpu_custom_call.1} parent=5 // pred_check_branch
        %209 = sbr.rel (%p206) target = $region12
      $region11: #{tpu_custom_call.1} parent=5 // pred_region
        %s210 = ssub.s32 %s18, 1
        // Predicated region
        $region13: #{tpu_custom_call.1} parent=11 // pred_check
          %p211 = pneg %p65
        $region14: #{tpu_custom_call.1} parent=11 // pred_check_branch
          %213 = sbr.rel (%p211) target = $region16
        $region15: #{tpu_custom_call.1} parent=11 // pred_region
          _
        $region16: #{tpu_custom_call.1} parent=11 // pred_fallthru
          _
        // Predicated region
        $region17: #{tpu_custom_call.1} parent=11 // pred_check
          %p214 = pneg %p86
        $region18: #{tpu_custom_call.1} parent=11 // pred_check_branch
          %216 = sbr.rel (%p214) target = $region20
        $region19: #{tpu_custom_call.1} parent=11 // pred_region
          _
        $region20: #{tpu_custom_call.1} parent=11 // pred_fallthru
          _
        // Predicated region
        $region21: #{tpu_custom_call.1} parent=11 // pred_check
          %p217 = pneg %p107
        $region22: #{tpu_custom_call.1} parent=11 // pred_check_branch
          %219 = sbr.rel (%p217) target = $region24
        $region23: #{tpu_custom_call.1} parent=11 // pred_region
          %221 = vsyncadd [#allocation3], 0
          %s222 = sshll.u32 %s3, 4
          %s223 = int_to_ptr.hbm [resolvable:$true] %s222
          %s224 = sshll.u32 [#allocation2], 4
          %s225 = int_to_ptr.vmem [resolvable:$true] %s224
          %230 = dma.hbm_to_vmem [thread:$0]  %s223, 256, %s225, [#allocation3], 64, 64, 4
        $region24: #{tpu_custom_call.1} parent=11 // pred_fallthru
          _
        // Predicated region
        $region25: #{tpu_custom_call.1} parent=11 // pred_check
          %p231 = pneg %p128
        $region26: #{tpu_custom_call.1} parent=11 // pred_check_branch
          %233 = sbr.rel (%p231) target = $region28
        $region27: #{tpu_custom_call.1} parent=11 // pred_region
          _
        $region28: #{tpu_custom_call.1} parent=11 // pred_fallthru
          _
        // Predicated region
        $region29: #{tpu_custom_call.1} parent=11 // pred_check
          %p234 = pneg %p149
        $region30: #{tpu_custom_call.1} parent=11 // pred_check_branch
          %236 = sbr.rel (%p234) target = $region32
        $region31: #{tpu_custom_call.1} parent=11 // pred_region
          _
        $region32: #{tpu_custom_call.1} parent=11 // pred_fallthru
          _
        // Predicated region
        $region33: #{tpu_custom_call.1} parent=11 // pred_check
          %p237 = pneg %p170
        $region34: #{tpu_custom_call.1} parent=11 // pred_check_branch
          %239 = sbr.rel (%p237) target = $region36
        $region35: #{tpu_custom_call.1} parent=11 // pred_region
          %241 = vsyncadd [#allocation6], 0
          %s242 = sshll.u32 %s6, 4
          %s243 = int_to_ptr.hbm [resolvable:$true] %s242
          %s244 = sshll.u32 [#allocation5], 4
          %s245 = int_to_ptr.vmem [resolvable:$true] %s244
          %250 = dma.hbm_to_vmem [thread:$0]  %s243, 512, %s245, [#allocation6], 256, 256, 16
        $region36: #{tpu_custom_call.1} parent=11 // pred_fallthru
          _
      $region12: #{tpu_custom_call.1} parent=5 // pred_fallthru
        _
      %p251 = scmp.lt.s32.totalorder %s18, 2
      // Predicated region
      $region37: #{tpu_custom_call.1} parent=5 // pred_check
        %p252 = pneg %p251
      $region38: #{tpu_custom_call.1} parent=5 // pred_check_branch
        %254 = sbr.rel (%p252) target = $region40
      $region39: #{tpu_custom_call.1} parent=5 // pred_region
        // Predicated region
        $region41: #{tpu_custom_call.1} parent=39 // pred_check
          %p255 = pneg %p38
        $region42: #{tpu_custom_call.1} parent=39 // pred_check_branch
          %257 = sbr.rel (%p255) target = $region44
        $region43: #{tpu_custom_call.1} parent=39 // pred_region
          %p258 = scmp.lt.s32.totalorder %s18, 1
          %s259 = scalar_select %p258, %s18, 1
          %s260 = smul.addr %s259, 8
          %s261 = smul.addr %s260, 8
          %s262 = scalar_lea.vmem %s0, %s261
        $region44: #{tpu_custom_call.1} parent=39 // pred_fallthru
          _
      $region40: #{tpu_custom_call.1} parent=5 // pred_fallthru
        _
      %p263 = scmp.le.s32.totalorder 1, %s18
      %p264 = scmp.lt.s32.totalorder %s18, 3
      %p265 = pnand %p263, %p264
      %p266 = pneg %p265
      // Predicated region
      $region45: #{tpu_custom_call.1} parent=5 // pred_check
        _
      $region46: #{tpu_custom_call.1} parent=5 // pred_check_branch
        %268 = sbr.rel (%p265) target = $region48
      $region47: #{tpu_custom_call.1} parent=5 // pred_region
        %s269 = ssub.s32 %s18, 1
        // Predicated region
        $region49: #{tpu_custom_call.1} parent=47 // pred_check
          %p270 = pneg %p107
        $region50: #{tpu_custom_call.1} parent=47 // pred_check_branch
          %272 = sbr.rel (%p270) target = $region52
        $region51: #{tpu_custom_call.1} parent=47 // pred_region
          %274 = dma.done [#allocation3], 256
        $region52: #{tpu_custom_call.1} parent=47 // pred_fallthru
          _
        // Predicated region
        $region53: #{tpu_custom_call.1} parent=47 // pred_check
          %p275 = pneg %p170
        $region54: #{tpu_custom_call.1} parent=47 // pred_check_branch
          %277 = sbr.rel (%p275) target = $region56
        $region55: #{tpu_custom_call.1} parent=47 // pred_region
          %279 = dma.done [#allocation6], 512
        $region56: #{tpu_custom_call.1} parent=47 // pred_fallthru
          _
        %p280 = scmp.lt.s32.totalorder %s23, 1
        %s281 = scalar_select %p280, %s23, 1
        %s282 = smul.addr %s281, 8
        %s283 = smul.addr %s282, 8
        %s284 = scalar_lea.vmem %s0, %s283
        %p285 = pneg %p44
        %p286 = pneg %p41
        %p287 = pneg %p65
        %p288 = pneg %p62
        %p289 = pneg %p86
        %p290 = pneg %p83
        %p291 = pneg %p107
        %p292 = pneg %p104
        %p293 = pneg %p128
        %p294 = pneg %p125
        %p295 = pneg %p149
        %p296 = pneg %p146
        %p297 = pneg %p170
        %p298 = pneg %p167
        %p299 = pneg %p196
        %p300 = pneg %p193
        %s301 = sand.u32 %s183, 1
        %s302 = scalar_lea.sflag [#allocation4], %s301
        %s303 = sand.u32 %s183, 1
        %s304 = smul.addr %s303, 16
        %s305 = scalar_lea.vmem [#allocation7], %s304
        %p306 = scmp.lt.s32.totalorder %s23, 1
        %s307 = scalar_select %p306, %s23, 1
        %s308 = smul.addr %s307, 8
        %s309 = smul.addr %s308, 8
        %s310 = scalar_lea.vmem %s0, %s309
        %v312 = vld [vmem:[%s310] sm:$0xff]
        %v313 = vld [vmem:[%s310 + $0x8] sm:$0xff]
        %v314 = vld [vmem:[%s310 + $0x10] sm:$0xff]
        %v315 = vld [vmem:[%s310 + $0x18] sm:$0xff]
        %v316 = vld [vmem:[%s310 + $0x20] sm:$0xff]
        %v317 = vld [vmem:[%s310 + $0x28] sm:$0xff]
        %v318 = vld [vmem:[%s310 + $0x30] sm:$0xff]
        %v319 = vld [vmem:[%s310 + $0x38] sm:$0xff]
        %v320 = vld [vmem:[%s1] sm:$0xff]
        %v321 = vld [vmem:[%s1 + $0x8] sm:$0xff]
        %v322 = vld [vmem:[%s1 + $0x10] sm:$0xff]
        %v323 = vld [vmem:[%s1 + $0x18] sm:$0xff]
        %325 = vset.pattern.permute.xlu0 0
        %326 = vperm.xlu0 %325, %v320
        %v327 = vpop.permute.xlu0 %326
        %330 = vset.pattern.permute.xlu0 0
        %331 = vperm.xlu0 %330, %v321
        %v332 = vpop.permute.xlu0 %331
        %335 = vset.pattern.permute.xlu0 0
        %336 = vperm.xlu0 %335, %v322
        %v337 = vpop.permute.xlu0 %336
        %340 = vset.pattern.permute.xlu0 0
        %341 = vperm.xlu0 %340, %v323
        %v342 = vpop.permute.xlu0 %341
        %v344 = vmul.f32 %v312, %v327
        %v345 = vmul.f32 %v313, %v327
        %v346 = vmul.f32 %v314, %v332
        %v347 = vmul.f32 %v315, %v332
        %v348 = vmul.f32 %v316, %v337
        %v349 = vmul.f32 %v317, %v337
        %v350 = vmul.f32 %v318, %v342
        %v351 = vmul.f32 %v319, %v342
        %v352 = vld [vmem:[%s2] sm:$0xff]
        %v353 = vld [vmem:[%s2 + $0x8] sm:$0xff]
        %v354 = vld [vmem:[%s2 + $0x10] sm:$0xff]
        %v355 = vld [vmem:[%s2 + $0x18] sm:$0xff]
        %357 = vset.pattern.permute.xlu0 0
        %358 = vperm.xlu0 %357, %v352
        %v359 = vpop.permute.xlu0 %358
        %362 = vset.pattern.permute.xlu0 0
        %363 = vperm.xlu0 %362, %v353
        %v364 = vpop.permute.xlu0 %363
        %367 = vset.pattern.permute.xlu0 0
        %368 = vperm.xlu0 %367, %v354
        %v369 = vpop.permute.xlu0 %368
        %372 = vset.pattern.permute.xlu0 0
        %373 = vperm.xlu0 %372, %v355
        %v374 = vpop.permute.xlu0 %373
        %v376 = vadd.f32 %v344, %v359
        %v377 = vadd.f32 %v345, %v359
        %v378 = vadd.f32 %v346, %v364
        %v379 = vadd.f32 %v347, %v364
        %v380 = vadd.f32 %v348, %v369
        %v381 = vadd.f32 %v349, %v369
        %v382 = vadd.f32 %v350, %v374
        %v383 = vadd.f32 %v351, %v374
        %v384 = vmax.f32 %v376, 0.0
        %v385 = vmax.f32 %v377, 0.0
        %v386 = vmax.f32 %v378, 0.0
        %v387 = vmax.f32 %v379, 0.0
        %v388 = vmax.f32 %v380, 0.0
        %v389 = vmax.f32 %v381, 0.0
        %v390 = vmax.f32 %v382, 0.0
        %v391 = vmax.f32 %v383, 0.0
        %v392 = vld [vmem:[#allocation2] sm:$0xf]
        %v393 = vld [vmem:[#allocation2 + $0x4] sm:$0xf]
        %v394 = vld [vmem:[#allocation2 + $0x8] sm:$0xf]
        %v395 = vld [vmem:[#allocation2 + $0xc] sm:$0xf]
        %v396 = vpack.c.bf16 %v386, %v384
        %v397 = vpack.c.bf16 %v387, %v385
        %v398 = vpack.c.bf16 %v390, %v388
        %v399 = vpack.c.bf16 %v391, %v389
        %v400 = vld [vmem:[%s4] sm:$0xff]
        %v401 = vld [vmem:[%s4 + $0x8] sm:$0xff]
        %v402 = vld [vmem:[%s4 + $0x10] sm:$0xff]
        %v403 = vld [vmem:[%s4 + $0x18] sm:$0xff]
        %405 = vset.pattern.permute.xlu0 0
        %406 = vperm.xlu0 %405, %v400
        %v407 = vpop.permute.xlu0 %406
        %410 = vset.pattern.permute.xlu0 0
        %411 = vperm.xlu0 %410, %v401
        %v412 = vpop.permute.xlu0 %411
        %415 = vset.pattern.permute.xlu0 0
        %416 = vperm.xlu0 %415, %v402
        %v417 = vpop.permute.xlu0 %416
        %420 = vset.pattern.permute.xlu0 0
        %421 = vperm.xlu0 %420, %v403
        %v422 = vpop.permute.xlu0 %421
        %v428 = vunpack.c.l.b16 %v392
        %v429 = vunpack.c.l.b16 %v393
        %v430 = vunpack.c.l.b16 %v394
        %v431 = vunpack.c.l.b16 %v395
        %v432 = vpack.c.b16 %v429, %v428
        %v433 = vpack.c.b16 %v431, %v430
        %vm434 = vcmask 261120
        %v436 = vsel %vm434, %v432, 0
        %v439 = vsel %vm434, %v433, 0
        %441 = vmatpush.bf16.msra.mxu0 0
        %442 = vmatpush.bf16.msra.mxu0 0
        %443 = vmatpush.bf16.msra.mxu0 0
        %444 = vmatpush.bf16.msra.mxu0 0
        %445 = vmatpush.bf16.msra.mxu0 0
        %446 = vmatpush.bf16.msra.mxu0 0
        %447 = vmatpush.bf16.msra.mxu0 %v398
        %448 = vmatpush.bf16.msra.mxu0 %v396
        %449 = vmatmul.bf16.gmra.mxu0 %v436
        %v450 = vpop.f32.mrf.mxu0
        %v451 = vadd.f32 %v407, %v450
        %v452 = vpop.f32.mrf.mxu0
        %v453 = vadd.f32 %v412, %v452
        %454 = vmatmul.bf16.gmra.mxu0 %v439
        %v455 = vpop.f32.mrf.mxu0
        %v456 = vadd.f32 %v417, %v455
        %v457 = vpop.f32.mrf.mxu0
        %v458 = vadd.f32 %v422, %v457
        %459 = vdwg.mxu0
        %460 = vmatpush.bf16.msra.mxu0 0
        %461 = vmatpush.bf16.msra.mxu0 0
        %462 = vmatpush.bf16.msra.mxu0 0
        %463 = vmatpush.bf16.msra.mxu0 0
        %464 = vmatpush.bf16.msra.mxu0 0
        %465 = vmatpush.bf16.msra.mxu0 0
        %466 = vmatpush.bf16.msra.mxu0 %v399
        %467 = vmatpush.bf16.msra.mxu0 %v397
        %468 = vmatmul.bf16.gmra.mxu0 %v436
        %v469 = vpop.f32.mrf.mxu0
        %v470 = vadd.f32 %v407, %v469
        %v471 = vpop.f32.mrf.mxu0
        %v472 = vadd.f32 %v412, %v471
        %473 = vmatmul.bf16.gmra.mxu0 %v439
        %v474 = vpop.f32.mrf.mxu0
        %v475 = vadd.f32 %v417, %v474
        %v476 = vpop.f32.mrf.mxu0
        %v477 = vadd.f32 %v422, %v476
        %478 = vdwg.mxu0
        %v479 = vmax.f32 %v451, 0.0
        %v480 = vmax.f32 %v470, 0.0
        %v481 = vmax.f32 %v453, 0.0
        %v482 = vmax.f32 %v472, 0.0
        %v483 = vmax.f32 %v456, 0.0
        %v484 = vmax.f32 %v475, 0.0
        %v485 = vmax.f32 %v458, 0.0
        %v486 = vmax.f32 %v477, 0.0
        %v487 = vld [vmem:[%s5] sm:$0xf]
        %v488 = vld [vmem:[%s5 + $0x4] sm:$0xf]
        %v489 = vld [vmem:[%s5 + $0x8] sm:$0xf]
        %v490 = vld [vmem:[%s5 + $0xc] sm:$0xf]
        %v491 = vld [vmem:[%s5 + $0x10] sm:$0xf]
        %v492 = vld [vmem:[%s5 + $0x14] sm:$0xf]
        %v493 = vld [vmem:[%s5 + $0x18] sm:$0xf]
        %v494 = vld [vmem:[%s5 + $0x1c] sm:$0xf]
        %v495 = vld [vmem:[%s5 + $0x20] sm:$0xf]
        %v496 = vpack.c.bf16 %v481, %v479
        %v497 = vpack.c.bf16 %v482, %v480
        %v498 = vpack.c.bf16 %v485, %v483
        %v499 = vpack.c.bf16 %v486, %v484
        %v509 = vunpack.c.l.b16 %v487
        %v510 = vunpack.c.l.b16 %v488
        %v511 = vunpack.c.l.b16 %v489
        %v512 = vunpack.c.l.b16 %v490
        %v513 = vunpack.c.l.b16 %v491
        %v514 = vunpack.c.l.b16 %v492
        %v515 = vunpack.c.l.b16 %v493
        %v516 = vunpack.c.l.b16 %v494
        %v517 = vunpack.c.l.b16 %v495
        %v518 = vpack.c.b16 %v510, %v509
        %v519 = vpack.c.b16 %v512, %v511
        %v520 = vpack.c.b16 %v514, %v513
        %v521 = vpack.c.b16 %v516, %v515
        %v522 = vpack.c.b16 %v517, %v517
        %v524 = vsel %vm434, %v518, 0
        %v527 = vsel %vm434, %v519, 0
        %v530 = vsel %vm434, %v520, 0
        %v533 = vsel %vm434, %v521, 0
        %v536 = vsel %vm434, %v522, 0
        %538 = vmatpush.bf16.msra.mxu0 0
        %539 = vmatpush.bf16.msra.mxu0 0
        %540 = vmatpush.bf16.msra.mxu0 0
        %541 = vmatpush.bf16.msra.mxu0 0
        %542 = vmatpush.bf16.msra.mxu0 0
        %543 = vmatpush.bf16.msra.mxu0 0
        %544 = vmatpush.bf16.msra.mxu0 %v498
        %545 = vmatpush.bf16.msra.mxu0 %v496
        %546 = vmatmul.bf16.gmra.mxu0 %v524
        %v547 = vpop.f32.mrf.mxu0
        %v548 = vadd.f32 0.0, %v547
        %v549 = vpop.f32.mrf.mxu0
        %v550 = vadd.f32 0.0, %v549
        %551 = vmatmul.bf16.gmra.mxu0 %v527
        %v552 = vpop.f32.mrf.mxu0
        %v553 = vadd.f32 0.0, %v552
        %v554 = vpop.f32.mrf.mxu0
        %v555 = vadd.f32 0.0, %v554
        %556 = vmatmul.bf16.gmra.mxu0 %v530
        %v557 = vpop.f32.mrf.mxu0
        %v558 = vadd.f32 0.0, %v557
        %v559 = vpop.f32.mrf.mxu0
        %v560 = vadd.f32 0.0, %v559
        %561 = vmatmul.bf16.gmra.mxu0 %v533
        %v562 = vpop.f32.mrf.mxu0
        %v563 = vadd.f32 0.0, %v562
        %v564 = vpop.f32.mrf.mxu0
        %v565 = vadd.f32 0.0, %v564
        %566 = vmatmul.bf16.gmra.mxu0 %v536
        %v567 = vpop.f32.mrf.mxu0
        %v568 = vadd.f32 0.0, %v567
        %v569 = vpop.f32.mrf.mxu0
        %570 = vdwg.mxu0
        %571 = vmatpush.bf16.msra.mxu0 0
        %572 = vmatpush.bf16.msra.mxu0 0
        %573 = vmatpush.bf16.msra.mxu0 0
        %574 = vmatpush.bf16.msra.mxu0 0
        %575 = vmatpush.bf16.msra.mxu0 0
        %576 = vmatpush.bf16.msra.mxu0 0
        %577 = vmatpush.bf16.msra.mxu0 %v499
        %578 = vmatpush.bf16.msra.mxu0 %v497
        %579 = vmatmul.bf16.gmra.mxu0 %v524
        %v580 = vpop.f32.mrf.mxu0
        %v581 = vadd.f32 0.0, %v580
        %v582 = vpop.f32.mrf.mxu0
        %v583 = vadd.f32 0.0, %v582
        %584 = vmatmul.bf16.gmra.mxu0 %v527
        %v585 = vpop.f32.mrf.mxu0
        %v586 = vadd.f32 0.0, %v585
        %v587 = vpop.f32.mrf.mxu0
        %v588 = vadd.f32 0.0, %v587
        %589 = vmatmul.bf16.gmra.mxu0 %v530
        %v590 = vpop.f32.mrf.mxu0
        %v591 = vadd.f32 0.0, %v590
        %v592 = vpop.f32.mrf.mxu0
        %v593 = vadd.f32 0.0, %v592
        %594 = vmatmul.bf16.gmra.mxu0 %v533
        %v595 = vpop.f32.mrf.mxu0
        %v596 = vadd.f32 0.0, %v595
        %v597 = vpop.f32.mrf.mxu0
        %v598 = vadd.f32 0.0, %v597
        %599 = vmatmul.bf16.gmra.mxu0 %v536
        %v600 = vpop.f32.mrf.mxu0
        %v601 = vadd.f32 0.0, %v600
        %v602 = vpop.f32.mrf.mxu0
        %603 = vdwg.mxu0
        %v604 = vld [vmem:[#allocation5] sm:$0xff]
        %v605 = vld [vmem:[#allocation5 + $0x8] sm:$0xff]
        %v606 = vld [vmem:[#allocation5 + $0x10] sm:$0x1]
        %v607 = vld [vmem:[#allocation5 + $0x18] sm:$0x1]
        %608 = vrot.lane.b32.xlu0 %v548, 17
        %v609 = vpop.permute.xlu0 %608
        %610 = vrot.lane.b32.xlu0 %v581, 17
        %v611 = vpop.permute.xlu0 %610
        %v612 = vlaneseq
        %v613 = vand.u32 %v612, 127
        %vm614 = vcmp.lt.s32.totalorder %v613, 17
        %v615 = vsel %vm614, %v609, %v611
        %v616 = vsel %vm614, %v611, %v609
        %v617 = vperm.slane %v604, 0
        %v618 = vperm.slane %v605, 0
        %v619 = vmul.f32 %v616, %v617
        %v620 = vmul.f32 %v615, %v618
        %v621 = vadd.f32 %v558, %v619
        %v622 = vadd.f32 %v591, %v620
        %623 = vrot.lane.b32.xlu0 %v550, 16
        %v624 = vpop.permute.xlu0 %623
        %625 = vrot.lane.b32.xlu0 %v583, 16
        %v626 = vpop.permute.xlu0 %625
        %vm627 = vcmp.lt.s32.totalorder %v613, 16
        %v628 = vsel %vm627, %v624, %v626
        %v629 = vsel %vm627, %v626, %v624
        %v630 = vperm.slane %v604, 1
        %v631 = vperm.slane %v605, 1
        %v632 = vmul.f32 %v629, %v630
        %v633 = vmul.f32 %v628, %v631
        %v634 = vadd.f32 %v621, %v632
        %v635 = vadd.f32 %v622, %v633
        %636 = vrot.lane.b32.xlu0 %v553, 15
        %v637 = vpop.permute.xlu0 %636
        %638 = vrot.lane.b32.xlu0 %v586, 15
        %v639 = vpop.permute.xlu0 %638
        %vm640 = vcmp.lt.s32.totalorder %v613, 15
        %v641 = vsel %vm640, %v637, %v639
        %v642 = vsel %vm640, %v639, %v637
        %v643 = vperm.slane %v604, 2
        %v644 = vperm.slane %v605, 2
        %v645 = vmul.f32 %v642, %v643
        %v646 = vmul.f32 %v641, %v644
        %v647 = vadd.f32 %v634, %v645
        %v648 = vadd.f32 %v635, %v646
        %649 = vrot.lane.b32.xlu0 %v555, 1
        %v650 = vpop.permute.xlu0 %649
        %651 = vrot.lane.b32.xlu0 %v588, 1
        %v652 = vpop.permute.xlu0 %651
        %vm653 = vcmp.lt.s32.totalorder %v613, 1
        %v654 = vsel %vm653, %v650, %v652
        %v655 = vsel %vm653, %v652, %v650
        %v656 = vperm.slane %v604, 3
        %v657 = vperm.slane %v605, 3
        %v658 = vmul.f32 %v655, %v656
        %v659 = vmul.f32 %v654, %v657
        %v660 = vadd.f32 %v647, %v658
        %v661 = vadd.f32 %v648, %v659
        %662 = vrot.lane.b32.xlu0 %v560, 127
        %v663 = vpop.permute.xlu0 %662
        %664 = vrot.lane.b32.xlu0 %v593, 127
        %v665 = vpop.permute.xlu0 %664
        %vm666 = vcmp.lt.s32.totalorder %v613, 127
        %v667 = vsel %vm666, %v663, %v665
        %v668 = vsel %vm666, %v665, %v663
        %v669 = vperm.slane %v604, 5
        %v670 = vperm.slane %v605, 5
        %v671 = vmul.f32 %v667, %v669
        %v672 = vmul.f32 %v668, %v670
        %v673 = vadd.f32 %v660, %v671
        %v674 = vadd.f32 %v661, %v672
        %675 = vrot.lane.b32.xlu0 %v563, 113
        %v676 = vpop.permute.xlu0 %675
        %677 = vrot.lane.b32.xlu0 %v596, 113
        %v678 = vpop.permute.xlu0 %677
        %vm679 = vcmp.lt.s32.totalorder %v613, 113
        %v680 = vsel %vm679, %v676, %v678
        %v681 = vsel %vm679, %v678, %v676
        %v682 = vperm.slane %v604, 6
        %v683 = vperm.slane %v605, 6
        %v684 = vmul.f32 %v680, %v682
        %v685 = vmul.f32 %v681, %v683
        %v686 = vadd.f32 %v673, %v684
        %v687 = vadd.f32 %v674, %v685
        %688 = vrot.lane.b32.xlu0 %v565, 112
        %v689 = vpop.permute.xlu0 %688
        %690 = vrot.lane.b32.xlu0 %v598, 112
        %v691 = vpop.permute.xlu0 %690
        %vm692 = vcmp.lt.s32.totalorder %v613, 112
        %v693 = vsel %vm692, %v689, %v691
        %v694 = vsel %vm692, %v691, %v689
        %v695 = vperm.slane %v604, 7
        %v696 = vperm.slane %v605, 7
        %v697 = vmul.f32 %v693, %v695
        %v698 = vmul.f32 %v694, %v696
        %v699 = vadd.f32 %v686, %v697
        %v700 = vadd.f32 %v687, %v698
        %701 = vrot.lane.b32.xlu0 %v568, 111
        %v702 = vpop.permute.xlu0 %701
        %703 = vrot.lane.b32.xlu0 %v601, 111
        %v704 = vpop.permute.xlu0 %703
        %vm705 = vcmp.lt.s32.totalorder %v613, 111
        %v706 = vsel %vm705, %v702, %v704
        %v707 = vsel %vm705, %v704, %v702
        %v708 = vperm.slane %v606, 0
        %v709 = vperm.slane %v607, 0
        %v710 = vmul.f32 %v706, %v708
        %v711 = vmul.f32 %v707, %v709
        %v712 = vadd.f32 %v699, %v710
        %v713 = vadd.f32 %v700, %v711
        %714 = vst [vmem:[%s305] sm:$0xff] %v712
        %715 = vst [vmem:[%s305 + $0x8] sm:$0xff] %v713
        %s716 = sand.u32 %s183, 1
        %s717 = scalar_lea.sflag [#allocation4], %s716
        %s718 = sand.u32 %s183, 1
        %s719 = smul.addr %s718, 16
        %s720 = scalar_lea.vmem [#allocation7], %s719
        // Predicated region
        $region57: #{tpu_custom_call.1} parent=47 // pred_check
          %p721 = pneg %p193
        $region58: #{tpu_custom_call.1} parent=47 // pred_check_branch
          %723 = sbr.rel (%p721) target = $region60
        $region59: #{tpu_custom_call.1} parent=47 // pred_region
          %725 = vsyncadd %s717, 0
          %s726 = smul.addr %s23, 2
          %s727 = smul.addr %s726, 8
          %s728 = scalar_lea.hbm %s7, %s727
          %s730 = sshll.u32 %s720, 4
          %s731 = int_to_ptr.vmem [resolvable:$true] %s730
          %s732 = sshll.u32 %s728, 4
          %s733 = int_to_ptr.hbm [resolvable:$true] %s732
          %735 = dma.vmem_to_hbm [thread:$0]  %s731, 256, %s733, %s717
        $region60: #{tpu_custom_call.1} parent=47 // pred_fallthru
          _
      $region48: #{tpu_custom_call.1} parent=5 // pred_fallthru
        _
      %p736 = scmp.le.s32.totalorder 2, %s18
      // Predicated region
      $region61: #{tpu_custom_call.1} parent=5 // pred_check
        %p737 = pneg %p736
      $region62: #{tpu_custom_call.1} parent=5 // pred_check_branch
        %739 = sbr.rel (%p737) target = $region64
      $region63: #{tpu_custom_call.1} parent=5 // pred_region
        %s740 = ssub.s32 %s18, 2
        // Predicated region
        $region65: #{tpu_custom_call.1} parent=63 // pred_check
          %p741 = pneg %p199
        $region66: #{tpu_custom_call.1} parent=63 // pred_check_branch
          %743 = sbr.rel (%p741) target = $region68
        $region67: #{tpu_custom_call.1} parent=63 // pred_region
          %s744 = sand.u32 %s184, 1
          %s745 = scalar_lea.sflag [#allocation4], %s744
          %s746 = sand.u32 %s184, 1
          %s747 = smul.addr %s746, 16
          %s748 = scalar_lea.vmem [#allocation7], %s747
          %750 = dma.done %s745, 256
        $region68: #{tpu_custom_call.1} parent=63 // pred_fallthru
          _
      $region64: #{tpu_custom_call.1} parent=5 // pred_fallthru
        _
    $region6: #{tpu_custom_call.1} parent=1 // loop_footer
      %s22 = sadd.s32 1, %s18
    $region7: #{tpu_custom_call.1} parent=1 // loop_footer_branch
      %17 = sbr.rel target = $region3
    $region8: #{tpu_custom_call.1} parent=1 // loop_exit
      _
    %751 = vsyncpa [#allocation3], 1
    %s752 = scalar_lea.sflag [#allocation3], 1
    %753 = vsyncpa %s752, 1
    %754 = vsyncpa [#allocation6], 1
    %755 = vsyncpa [#allocation4], 1
    %s756 = scalar_lea.sflag [#allocation4], 1
    %757 = vsyncpa %s756, 1

</llo_original>
